<compile_context>
chip_gen: v6e
topology: v6e:2x2x1
jax: 0.10.0
libtpu: 0.0.40
codegen_flags: <defaults>
</compile_context>

<pallas_src>
import math

import jax
import jax.numpy as jnp
from jax.experimental import pallas as pl
from jax.experimental.pallas import tpu as pltpu


def _round_up(n, m):
    return ((n + m - 1) // m) * m


def _broadcast_rows_kernel(logp_ref, probs_ref, out_logp_ref, out_probs_ref):
    """Broadcast the (1, p) parameter rows to every row of this batch tile."""
    out_logp_ref[...] = jnp.broadcast_to(
        logp_ref[...], out_logp_ref.shape).astype(out_logp_ref.dtype)
    out_probs_ref[...] = jnp.broadcast_to(
        probs_ref[...], out_probs_ref.shape).astype(out_probs_ref.dtype)


def multi_categorical_marginal_forward(x, logits, vect_classes, *,
                                       block_rows=4096,
                                       out_dtype=jnp.float32,
                                       materialize_batch=True):
    """Array equivalent of MultiCategoricalMarginalModel(vect_classes).forward(x).

    Returns (logp, probs), each of shape x.shape[:-1] + (sum(vect_classes),); every
    group segment along the last dim is independently normalized (the parameters of
    the per-group OneHotCategorical distributions, broadcast over the batch).
    With materialize_batch=False the un-broadcast [1,...,1, p] rows are returned
    instead (all batch rows are identical), skipping the kernel entirely.
    """
    vect_classes = tuple(int(c) for c in vect_classes)
    p = int(sum(vect_classes))
    assert logits.shape == (p,)

    batch_shape = x.shape[:-1]
    b = int(math.prod(batch_shape)) if batch_shape else 1

    # --- per-group normalization, hoisted out of the grid loop (done once) ---
    lg = logits.astype(jnp.float32)
    segs, off = [], 0
    for c in vect_classes:
        seg = lg[off:off + c]
        m = jnp.max(seg)
        segs.append(seg - (m + jnp.log(jnp.sum(jnp.exp(seg - m)))))
        off += c
    logp_row = jnp.concatenate(segs)[None, :]        # [1, p] log-probs
    probs_row = jnp.exp(logp_row)                    # [1, p] probs

    if not materialize_batch:
        shape = (1,) * len(batch_shape) + (p,)
        return (logp_row.reshape(shape).astype(out_dtype),
                probs_row.reshape(shape).astype(out_dtype))

    # Row tile: multiple of 8, and small enough that the grid has >=2 blocks
    # whenever possible (v7x megacore); a single full-extent block otherwise.
    tb = min(_round_up(int(block_rows), 8), _round_up(pl.cdiv(b, 2), 8))
    if tb >= b:
        tb = b
    grid = (pl.cdiv(b, tb),)

    logp, probs = pl.pallas_call(
        _broadcast_rows_kernel,
        out_shape=(jax.ShapeDtypeStruct((b, p), out_dtype),
                   jax.ShapeDtypeStruct((b, p), out_dtype)),
        grid=grid,
        in_specs=[
            pl.BlockSpec((1, p), lambda i: (0, 0)),   # VMEM-resident, DMA'd once
            pl.BlockSpec((1, p), lambda i: (0, 0)),   # VMEM-resident, DMA'd once
        ],
        out_specs=(
            pl.BlockSpec((tb, p), lambda i: (i, 0)),
            pl.BlockSpec((tb, p), lambda i: (i, 0)),
        ),
        compiler_params=pltpu.CompilerParams(
            dimension_semantics=("parallel",),        # batch tiles across both v7x TCs
            vmem_limit_bytes=32 * 1024 * 1024,
        ),
    )(logp_row, probs_row)

    return (logp.reshape(batch_shape + (p,)),
            probs.reshape(batch_shape + (p,)))


def reference_forward(x, logits, vect_classes):
    """Pure-JAX reference of the same math (per-group normalization, batch broadcast)."""
    batch_shape = x.shape[:-1]
    lps, prs, off = [], [], 0
    for c in vect_classes:
        seg = logits[off:off + c].astype(jnp.float32)
        lps.append(jnp.broadcast_to(jax.nn.log_softmax(seg), batch_shape + (c,)))
        prs.append(jnp.broadcast_to(jax.nn.softmax(seg), batch_shape + (c,)))
        off += c
    return jnp.concatenate(lps, axis=-1), jnp.concatenate(prs, axis=-1)


def _check(x, logits, vect_classes, **kw):
    logp, probs = jax.block_until_ready(
        multi_categorical_marginal_forward(x, logits, vect_classes, **kw))
    logp_ref, probs_ref = reference_forward(x, logits, vect_classes)
    p = sum(vect_classes)
    assert logp.shape == x.shape[:-1] + (p,) and probs.shape == x.shape[:-1] + (p,)
    assert jnp.allclose(logp, logp_ref, atol=1e-5, rtol=1e-5)
    assert jnp.allclose(probs, probs_ref, atol=1e-5, rtol=1e-5)
    off = 0
    for c in vect_classes:                 # each group's probabilities sum to 1 per row
        assert jnp.allclose(jnp.sum(probs[..., off:off + c], axis=-1), 1.0, atol=1e-5)
        off += c
    return logp, probs


if __name__ == "__main__":
    key = jax.random.PRNGKey(0)
    vect_classes = (3, 5, 4, 6)            # 4 categorical groups, 18 total logits
    B, condition_size = 8, 16
    P = sum(vect_classes)

    k_logit, k_x1, k_x2 = jax.random.split(key, 3)
    # nn.Parameter is initialized to zeros in torch; use non-trivial learned values
    # here so the per-group normalization is actually exercised.
    logits = 0.5 * jax.random.normal(k_logit, (P,), jnp.float32)

    # small batch (single full-extent block)
    x = jax.random.normal(k_x1, (B, condition_size), jnp.float32)
    _check(x, logits, vect_classes)

    # non-multiple batch size -> 2 grid blocks with a partial trailing block
    # (locks in the output-masking behaviour flagged in the review)
    x2 = jax.random.normal(k_x2, (13, condition_size), jnp.float32)
    _check(x2, logits, vect_classes)

    # un-broadcast parameter rows (lazy-broadcast API option)
    lp_row, pr_row = multi_categorical_marginal_forward(
        x, logits, vect_classes, materialize_batch=False)
    assert lp_row.shape == (1, P) and pr_row.shape == (1, P)

    print("KERNEL_OK")
</pallas_src>

<mosaic_0001>
module attributes {stable_mosaic.version = 11 : i64} {
  func.func @_broadcast_rows_kernel(%arg0: i32, %arg1: memref<1x18xf32, #tpu.memory_space<vmem>>, %arg2: memref<1x18xf32, #tpu.memory_space<vmem>>, %arg3: memref<8x18xf32, #tpu.memory_space<vmem>>, %arg4: memref<8x18xf32, #tpu.memory_space<vmem>>) attributes {dimension_semantics = [#tpu.dimension_semantics<parallel>], iteration_bounds = array<i64: 1>, scalar_prefetch = 0 : i64, scratch_operands = 0 : i64, tpu.core_type = #tpu.core_type<tc>, window_params = [{pipeline_mode = #tpu.pipeline_mode<synchronous>, transform_indices = @transform_0, window_bounds = array<i64: 1, 18>}, {pipeline_mode = #tpu.pipeline_mode<synchronous>, transform_indices = @transform_1, window_bounds = array<i64: 1, 18>}, {transform_indices = @transform_2, window_bounds = array<i64: 8, 18>}, {transform_indices = @transform_3, window_bounds = array<i64: 8, 18>}]} {
    %c0 = arith.constant 0 : index
    %c0_0 = arith.constant 0 : index
    %0 = vector.load %arg1[%c0, %c0_0] : memref<1x18xf32, #tpu.memory_space<vmem>>, vector<1x18xf32>
    %1 = vector.shape_cast %0 : vector<1x18xf32> to vector<1x18xf32>
    %2 = vector.broadcast %1 : vector<1x18xf32> to vector<8x18xf32>
    %c0_1 = arith.constant 0 : index
    %c0_2 = arith.constant 0 : index
    %3 = vector.load %arg3[%c0_1, %c0_2] : memref<8x18xf32, #tpu.memory_space<vmem>>, vector<8x18xf32>
    tpu.vector_store %arg3[%c0_1, %c0_2], %2 {strides = array<i32>} : memref<8x18xf32, #tpu.memory_space<vmem>>, vector<8x18xf32>,
    %c0_3 = arith.constant 0 : index
    %c0_4 = arith.constant 0 : index
    %4 = vector.load %arg2[%c0_3, %c0_4] : memref<1x18xf32, #tpu.memory_space<vmem>>, vector<1x18xf32>
    %5 = vector.shape_cast %4 : vector<1x18xf32> to vector<1x18xf32>
    %6 = vector.broadcast %5 : vector<1x18xf32> to vector<8x18xf32>
    %c0_5 = arith.constant 0 : index
    %c0_6 = arith.constant 0 : index
    %7 = vector.load %arg4[%c0_5, %c0_6] : memref<8x18xf32, #tpu.memory_space<vmem>>, vector<8x18xf32>
    tpu.vector_store %arg4[%c0_5, %c0_6], %6 {strides = array<i32>} : memref<8x18xf32, #tpu.memory_space<vmem>>, vector<8x18xf32>,
    return
  }
  func.func @transform_0(%arg0: i32) -> (i32, i32) {
    %c0_i32 = arith.constant 0 : i32
    %c0_i32_0 = arith.constant 0 : i32
    %c0_i32_1 = arith.constant 0 : i32
    return %c0_i32, %c0_i32_0 : i32, i32
  }
  func.func @transform_1(%arg0: i32) -> (i32, i32) {
    %c0_i32 = arith.constant 0 : i32
    %c0_i32_0 = arith.constant 0 : i32
    %c0_i32_1 = arith.constant 0 : i32
    return %c0_i32, %c0_i32_0 : i32, i32
  }
  func.func @transform_2(%arg0: i32) -> (i32, i32) {
    %c0_i32 = arith.constant 0 : i32
    %c0_i32_0 = arith.constant 0 : i32
    return %arg0, %c0_i32 : i32, i32
  }
  func.func @transform_3(%arg0: i32) -> (i32, i32) {
    %c0_i32 = arith.constant 0 : i32
    %c0_i32_0 = arith.constant 0 : i32
    return %arg0, %c0_i32 : i32, i32
  }
}

</mosaic_0001>

<llo_original>
// kernel: tpu_custom_call.1
$region0: #{tpu_custom_call.1}
  #allocation0 [shape = 'u32[]', space=smem, size = 0x4, offset = 0x4, fixed_abs, tag = 'smem constant byte address 0x4 - core index']
  #allocation1 [shape = 'u32[144,128]{1,0:T(1,128)}', space=vmem, size = 0x12000, scoped, tag = 'internal scratch']
  %s0 = inlined_call_operand.hbm [shape: f32[1,18], index: 0, kind: input, shape index: {}]
  %s1 = inlined_call_operand.vmem [shape: f32[1,18], index: 1, kind: input, shape index: {}]
  %s2 = inlined_call_operand.hbm [shape: f32[8,18], index: 2, kind: output, shape index: {0}]
  %s3 = inlined_call_operand.hbm [shape: f32[8,18], index: 3, kind: output, shape index: {1}]
  %4 = xla_tuple %s2, %s3
  %s5 = sld [smem:[#allocation0]]
  $region30: #{tpu_custom_call.1} parent=0
    _
  %s7 = ssub.s32 1, %s5
  %s8 = scalar_select 0, %s7, %s5
  $region1: #{tpu_custom_call.1} parent=0
    #allocation2 [shape = 'u8[512]{0}', space=vmem, size = 0x400, scoped, tag = 'input window, operand 0, single buffered']
    #allocation3 [shape = 's32[1]{0}', space=sflag, size = 0x4, scoped, tag = 'scoped memory for tpu_custom_call.1']
    #allocation4 [shape = 's32[1]{0}', space=sflag, size = 0x4, scoped, tag = 'scoped memory for tpu_custom_call.1']
    #allocation5 [shape = 'u8[4096]{0}', space=vmem, size = 0x1000, scoped, tag = 'output window, operand 0, single buffered']
    #allocation6 [shape = 'u8[4096]{0}', space=vmem, size = 0x1000, scoped, tag = 'output window, operand 1, single buffered']
    #allocation7 [shape = 's32[1]{0}', space=sflag, size = 0x4, scoped, tag = 'scoped memory for tpu_custom_call.1']
    %9 = vsyncpa [#allocation3], 0
    %10 = vsyncpa [#allocation4], 0
    %11 = vsyncpa [#allocation7], 0
    // Predicated region
    $region2: #{tpu_custom_call.1} parent=1 // pred_check
      _
    $region3: #{tpu_custom_call.1} parent=1 // pred_check_branch
      %13 = sbr.rel (0) target = $region5
    $region4: #{tpu_custom_call.1} parent=1 // pred_region
      %s15 = ssub.s32 16, 16
      %16 = vsyncadd [#allocation3], %s15
      %s18 = sshll.u32 [#allocation2], 4
      %s19 = int_to_ptr.vmem [resolvable:$true] %s18
      %21 = dma.hbm_to_vmem [thread:$0]  %s0, 16, %s19, [#allocation3]
    $region5: #{tpu_custom_call.1} parent=1 // pred_fallthru
      _
    // Predicated region
    $region6: #{tpu_custom_call.1} parent=1 // pred_check
      _
    $region7: #{tpu_custom_call.1} parent=1 // pred_check_branch
      %23 = sbr.rel (0) target = $region9
    $region8: #{tpu_custom_call.1} parent=1 // pred_region
      _
    $region9: #{tpu_custom_call.1} parent=1 // pred_fallthru
      _
    // Predicated region
    $region10: #{tpu_custom_call.1} parent=1 // pred_check
      _
    $region11: #{tpu_custom_call.1} parent=1 // pred_check_branch
      %25 = sbr.rel (0) target = $region13
    $region12: #{tpu_custom_call.1} parent=1 // pred_region
      %26 = dma.done [#allocation3], 16
    $region13: #{tpu_custom_call.1} parent=1 // pred_fallthru
      _
    %v27 = vld [vmem:[#allocation2] sm:$0x1]
    %v29 = vlaneseq
    %v30 = vshrl.u32 %v29, 7
    %v31 = vsub.s32 0, %v30
    %v32 = vrot.slane %v27, %v31
    %vm34 = vcmask 146432
    %35 = vst.msk [vmem:[#allocation5] sm:$0xff] %vm34, %v32
    %v36 = vld [vmem:[%s1] sm:$0x1]
    %v38 = vlaneseq
    %v39 = vshrl.u32 %v38, 7
    %v40 = vsub.s32 0, %v39
    %v41 = vrot.slane %v36, %v40
    %43 = vst.msk [vmem:[#allocation6] sm:$0xff] %vm34, %v41
    // Predicated region
    $region14: #{tpu_custom_call.1} parent=1 // pred_check
      _
    $region15: #{tpu_custom_call.1} parent=1 // pred_check_branch
      %45 = sbr.rel (0) target = $region17
    $region16: #{tpu_custom_call.1} parent=1 // pred_region
      %s47 = ssub.s32 128, 128
      %48 = vsyncadd [#allocation4], %s47
      %s50 = sshll.u32 [#allocation5], 4
      %s51 = int_to_ptr.vmem [resolvable:$true] %s50
      %53 = dma.vmem_to_hbm [thread:$0]  %s51, 128, %s2, [#allocation4]
    $region17: #{tpu_custom_call.1} parent=1 // pred_fallthru
      _
    // Predicated region
    $region18: #{tpu_custom_call.1} parent=1 // pred_check
      _
    $region19: #{tpu_custom_call.1} parent=1 // pred_check_branch
      %55 = sbr.rel (0) target = $region21
    $region20: #{tpu_custom_call.1} parent=1 // pred_region
      %s57 = ssub.s32 128, 128
      %58 = vsyncadd [#allocation7], %s57
      %s60 = sshll.u32 [#allocation6], 4
      %s61 = int_to_ptr.vmem [resolvable:$true] %s60
      %63 = dma.vmem_to_hbm [thread:$0]  %s61, 128, %s3, [#allocation7]
    $region21: #{tpu_custom_call.1} parent=1 // pred_fallthru
      _
    // Predicated region
    $region22: #{tpu_custom_call.1} parent=1 // pred_check
      _
    $region23: #{tpu_custom_call.1} parent=1 // pred_check_branch
      %65 = sbr.rel (0) target = $region25
    $region24: #{tpu_custom_call.1} parent=1 // pred_region
      %66 = dma.done [#allocation4], 128
    $region25: #{tpu_custom_call.1} parent=1 // pred_fallthru
      _
    // Predicated region
    $region26: #{tpu_custom_call.1} parent=1 // pred_check
      _
    $region27: #{tpu_custom_call.1} parent=1 // pred_check_branch
      %68 = sbr.rel (0) target = $region29
    $region28: #{tpu_custom_call.1} parent=1 // pred_region
      %69 = dma.done [#allocation7], 128
    $region29: #{tpu_custom_call.1} parent=1 // pred_fallthru
      _
    %70 = vsyncpa [#allocation3], 1
    %71 = vsyncpa [#allocation4], 1
    %72 = vsyncpa [#allocation7], 1

</llo_original>
